<compile_context>
chip_gen: v7x
topology: tpu7x:2x2x1
jax: 0.10.0
libtpu: 0.0.40
codegen_flags: <defaults>
</compile_context>

<pallas_src>
import functools

import numpy as np
import jax
import jax.numpy as jnp
from jax.experimental import pallas as pl
from jax.experimental.pallas import tpu as pltpu


# -----------------------------------------------------------------------------
# Pallas kernel: tiled GEMM + per-column affine (BN / bias) + optional ReLU.
# Accumulates directly into the VMEM-resident f32 output tile (no scratch).
# -----------------------------------------------------------------------------
def _matmul_affine_kernel(a_ref, b_ref, scale_ref, shift_ref, o_ref, *, relu):
    k = pl.program_id(2)

    @pl.when(k == 0)
    def _init():
        o_ref[...] = jnp.zeros_like(o_ref)

    o_ref[...] += jnp.dot(a_ref[...], b_ref[...],
                          preferred_element_type=jnp.float32)

    @pl.when(k == pl.num_programs(2) - 1)
    def _finalize():
        out = o_ref[...] * scale_ref[...] + shift_ref[...]
        if relu:
            out = jnp.maximum(out, 0.0)
        o_ref[...] = out


def _round_up(x, m):
    return ((x + m - 1) // m) * m


def _choose_tk(K):
    """Pick (Kp, tk): collapse K grid when small, else fat tiles, min padding."""
    Kp = _round_up(K, 128)
    if Kp <= 512:
        return Kp, Kp
    best = None
    for tk in (512, 384, 256, 128):
        Kpc = _round_up(K, tk)
        cand = (Kpc, -tk, tk)          # minimize padded K, then prefer fat tk
        if best is None or cand < best:
            best = cand
    return best[0], best[2]


def prep_gemm(w_kn, scale, shift):
    """Pre-pad / pre-cast a (K, N) weight + per-output affine ONCE at init."""
    K, N = w_kn.shape
    Kp, tk = _choose_tk(K)
    Np = _round_up(N, 128)
    tn = 256 if (Np % 256 == 0) else 128
    w_p = jnp.zeros((Kp, Np), jnp.bfloat16).at[:K, :N].set(
        w_kn.astype(jnp.bfloat16))
    sc = jnp.zeros((1, Np), jnp.float32).at[0, :N].set(
        scale.astype(jnp.float32))
    sh = jnp.zeros((1, Np), jnp.float32).at[0, :N].set(
        shift.astype(jnp.float32))
    return {"w": w_p, "scale": sc, "shift": sh,
            "K": K, "N": N, "Kp": Kp, "Np": Np, "tk": tk, "tn": tn}


def prep_conv2d(w_ochw, scale, shift):
    O, C, kh, kw = w_ochw.shape
    # NHWC patch order is [dy, dx, C] -> weight laid out (kh, kw, C, O).
    w_kn = jnp.transpose(w_ochw, (2, 3, 1, 0)).reshape(kh * kw * C, O)
    gw = prep_gemm(w_kn, scale, shift)
    gw["kh"], gw["kw"] = kh, kw
    return gw


def prep_conv1d(w_ock, bias):
    O, C, k = w_ock.shape
    w_kn = jnp.transpose(w_ock, (2, 1, 0)).reshape(k * C, O)   # [tap, Cin] order
    gw = prep_gemm(w_kn, jnp.ones((O,), jnp.float32), bias)
    gw["k"] = k
    return gw


def matmul_prepared(a, gw, relu=False):
    """relu_opt((a @ W) * scale + shift) with W/scale/shift pre-padded."""
    M, K = a.shape
    assert K == gw["K"], (K, gw["K"])
    Kp, Np, tk, tn = gw["Kp"], gw["Np"], gw["tk"], gw["tn"]

    tm = 256 if M > 256 else _round_up(max(M, 16), 16)   # bf16 sublane packing
    Mp = _round_up(M, tm)

    a_p = jnp.pad(a.astype(jnp.bfloat16), ((0, Mp - M), (0, Kp - K)))

    out = pl.pallas_call(
        functools.partial(_matmul_affine_kernel, relu=relu),
        out_shape=jax.ShapeDtypeStruct((Mp, Np), jnp.float32),
        grid_spec=pltpu.PrefetchScalarGridSpec(
            num_scalar_prefetch=0,
            grid=(Mp // tm, Np // tn, Kp // tk),
            in_specs=[
                pl.BlockSpec((tm, tk), lambda i, j, k: (i, k)),
                pl.BlockSpec((tk, tn), lambda i, j, k: (k, j)),
                pl.BlockSpec((1, tn), lambda i, j, k: (0, j)),
                pl.BlockSpec((1, tn), lambda i, j, k: (0, j)),
            ],
            out_specs=pl.BlockSpec((tm, tn), lambda i, j, k: (i, j)),
        ),
        compiler_params=pltpu.CompilerParams(
            dimension_semantics=("parallel", "parallel", "arbitrary"),
            vmem_limit_bytes=32 * 1024 * 1024,
        ),
    )(a_p, gw["w"], gw["scale"], gw["shift"])
    return out[:M, :gw["N"]]


# -----------------------------------------------------------------------------
# Conv glue (NHWC im2col in plain JAX, GEMM in Pallas)
# -----------------------------------------------------------------------------
def _im2col_nhwc(x, kh, kw, stride, padding):
    """x: (B, H, W, C) -> patches (B*OH*OW, kh*kw*C), K order [dy, dx, C]."""
    B, H, W, C = x.shape
    xp = jnp.pad(x, ((0, 0), (padding, padding), (padding, padding), (0, 0)))
    Hp, Wp = H + 2 * padding, W + 2 * padding
    OH = (Hp - kh) // stride + 1
    OW = (Wp - kw) // stride + 1
    cols = []
    for dy in range(kh):
        for dx in range(kw):
            cols.append(xp[:, dy:dy + (OH - 1) * stride + 1:stride,
                              dx:dx + (OW - 1) * stride + 1:stride, :])
    patches = jnp.concatenate(cols, axis=-1)        # (B, OH, OW, kh*kw*C)
    return patches.reshape(B * OH * OW, kh * kw * C), OH, OW


def conv2d_bn_nhwc(x, gw, stride, padding, relu):
    """PyTorch Conv2d (no bias) + eval BatchNorm + optional ReLU, NHWC layout."""
    B = x.shape[0]
    a, OH, OW = _im2col_nhwc(x, gw["kh"], gw["kw"], stride, padding)
    out = matmul_prepared(a, gw, relu=relu)          # (B*OH*OW, O)
    return out.reshape(B, OH, OW, gw["N"])


def conv1d_same_nhwc(x, gw):
    """PyTorch Conv1d(k=3, padding='same'); x: (B, T, Cin) channels-last."""
    B, T, C = x.shape
    k = gw["k"]
    p = (k - 1) // 2
    xp = jnp.pad(x, ((0, 0), (p, p), (0, 0)))
    cols = jnp.concatenate([xp[:, i:i + T, :] for i in range(k)], axis=-1)
    a = cols.reshape(B * T, k * C)
    out = matmul_prepared(a, gw, relu=False)
    return out.reshape(B, T, gw["N"])                # (B, T, Cout)


def max_pool_3x3_s2_p1_nhwc(x):
    return jax.lax.reduce_window(
        x, -jnp.inf, jax.lax.max,
        window_dimensions=(1, 3, 3, 1), window_strides=(1, 2, 2, 1),
        padding=((0, 0), (1, 1), (1, 1), (0, 0)))


# -----------------------------------------------------------------------------
# ResNet-18 (conv1 modified to 1 input channel, fc = Identity), NHWC trunk
# -----------------------------------------------------------------------------
def basic_block(x, blk, stride):
    identity = x
    out = conv2d_bn_nhwc(x, blk["conv1"], stride=stride, padding=1, relu=True)
    out = conv2d_bn_nhwc(out, blk["conv2"], stride=1, padding=1, relu=False)
    if "ds" in blk:
        identity = conv2d_bn_nhwc(x, blk["ds"], stride=stride, padding=0,
                                  relu=False)
    return jnp.maximum(out + identity, 0.0)


def resnet18_forward(p, x):
    x = conv2d_bn_nhwc(x, p["conv1"], stride=2, padding=3, relu=True)
    x = max_pool_3x3_s2_p1_nhwc(x)
    for li, layer in enumerate(p["layers"]):
        for bi, blk in enumerate(layer):
            stride = 2 if (li > 0 and bi == 0) else 1
            x = basic_block(x, blk, stride)
    return jnp.mean(x, axis=(1, 2))   # AdaptiveAvgPool2d(1) + flatten; fc=Identity


# -----------------------------------------------------------------------------
# MMWav2Vec2Model forward
# -----------------------------------------------------------------------------
def encode_audio(params, input_values):
    # Stand-in for wav2vec2ctc(input_values).logits: frame + linear -> vocab.
    B, L = input_values.shape
    frame = params["frame_len"]
    V = params["vocab_size"]
    T = L // frame
    a = input_values[:, :T * frame].reshape(B * T, frame)
    out = matmul_prepared(a, params["audio"], relu=False)
    return out.reshape(B, T, V)


def encode_video(params, video_values):
    B, S, C, H, W = video_values.shape
    # single NCHW -> NHWC conversion; trunk stays channels-last.
    x = video_values.reshape(B * S, C, H, W).transpose(0, 2, 3, 1)
    feat = resnet18_forward(params["resnet"], x)                 # (B*S, 512)
    feat = feat.reshape(B, S, 512)
    vt = conv1d_same_nhwc(feat, params["tconv"])                 # (B, S, 1024)
    a = vt.reshape(B * S, 1024)
    V = params["vocab_size"]
    logits = matmul_prepared(a, params["lm"], relu=False)
    return logits.reshape(B, S, V)


def mm_wav2vec2_forward(params, input_values, video_values=None):
    logits = encode_audio(params, input_values)
    if video_values is not None:
        video_logits = encode_video(params, video_values)
        video_logits = jnp.tile(video_logits, (1, 2, 1))   # torch .repeat(1, 2, 1)
        logits = logits + video_logits[:, :logits.shape[1], :]
    return logits


# -----------------------------------------------------------------------------
# Deterministic parameter init (shapes from the module's __init__).
# All GEMM weights are padded / transposed / BN-folded here, ONCE.
# -----------------------------------------------------------------------------
def init_params(key, vocab_size=32, frame_len=320):
    keys = iter(jax.random.split(key, 512))

    def nk():
        return next(keys)

    def conv_w(shape):
        fan_in = int(np.prod(shape[1:]))
        return jax.random.normal(nk(), shape, jnp.float32) / np.sqrt(fan_in)

    def bn(c):
        gamma = 1.0 + 0.1 * jax.random.normal(nk(), (c,), jnp.float32)
        beta = 0.1 * jax.random.normal(nk(), (c,), jnp.float32)
        mean = 0.1 * jax.random.normal(nk(), (c,), jnp.float32)
        var = 1.0 + 0.1 * jnp.abs(jax.random.normal(nk(), (c,), jnp.float32))
        scale = gamma / jnp.sqrt(var + 1e-5)
        shift = beta - mean * scale
        return scale, shift

    resnet = {}
    s1, b1 = bn(64)
    resnet["conv1"] = prep_conv2d(conv_w((64, 1, 7, 7)), s1, b1)
    layers = []
    cfg = [(64, 64), (64, 128), (128, 256), (256, 512)]
    for li, (cin, cout) in enumerate(cfg):
        blocks = []
        for bi in range(2):
            in_c = cin if bi == 0 else cout
            blk = {}
            s, b = bn(cout)
            blk["conv1"] = prep_conv2d(conv_w((cout, in_c, 3, 3)), s, b)
            s, b = bn(cout)
            blk["conv2"] = prep_conv2d(conv_w((cout, cout, 3, 3)), s, b)
            if bi == 0 and li > 0:
                s, b = bn(cout)
                blk["ds"] = prep_conv2d(conv_w((cout, in_c, 1, 1)), s, b)
            blocks.append(blk)
        layers.append(blocks)
    resnet["layers"] = layers

    tconv_w = conv_w((1024, 512, 3))
    tconv_b = 0.01 * jax.random.normal(nk(), (1024,), jnp.float32)
    lm_w = conv_w((vocab_size, 1024))
    lm_b = 0.01 * jax.random.normal(nk(), (vocab_size,), jnp.float32)
    audio_w = conv_w((vocab_size, frame_len))
    audio_b = 0.01 * jax.random.normal(nk(), (vocab_size,), jnp.float32)

    ones_v = jnp.ones((vocab_size,), jnp.float32)
    params = {
        "resnet": resnet,
        "tconv": prep_conv1d(tconv_w, tconv_b),
        "lm": prep_gemm(lm_w.T, ones_v, lm_b),
        "audio": prep_gemm(audio_w.T, ones_v, audio_b),
        "vocab_size": vocab_size,
        "frame_len": frame_len,
    }
    return params


if __name__ == "__main__":
    key = jax.random.PRNGKey(0)
    params = init_params(key, vocab_size=32, frame_len=320)

    k1, k2 = jax.random.split(jax.random.PRNGKey(0), 2)
    # audio: (batch=2, samples=2560) -> 8 audio frames of logits
    input_values = jax.random.normal(k1, (2, 2560), jnp.float32)
    # video: (batch=2, seq=4, channels=1, H=16, W=16)  (torch NCHW per frame)
    video_values = jax.random.normal(k2, (2, 4, 1, 16, 16), jnp.float32)

    logits = mm_wav2vec2_forward(params, input_values, video_values)
    logits = jax.block_until_ready(logits)
    assert logits.shape == (2, 8, 32), logits.shape
    assert bool(jnp.all(jnp.isfinite(logits)))
    print("KERNEL_OK")
</pallas_src>

<mosaic_0001>
module attributes {stable_mosaic.version = 11 : i64} {
  func.func @_matmul_affine_kernel(%arg0: i32, %arg1: i32, %arg2: i32, %arg3: memref<16x384xbf16, #tpu.memory_space<vmem>>, %arg4: memref<384x128xbf16, #tpu.memory_space<vmem>>, %arg5: memref<1x128xf32, #tpu.memory_space<vmem>>, %arg6: memref<1x128xf32, #tpu.memory_space<vmem>>, %arg7: memref<16x128xf32, #tpu.memory_space<vmem>>) attributes {dimension_semantics = [#tpu.dimension_semantics<parallel>, #tpu.dimension_semantics<parallel>, #tpu.dimension_semantics<arbitrary>], iteration_bounds = array<i64: 1, 1, 1>, scalar_prefetch = 0 : i64, scratch_operands = 0 : i64, tpu.core_type = #tpu.core_type<tc>, window_params = [{transform_indices = @transform_0, window_bounds = array<i64: 16, 384>}, {transform_indices = @transform_1, window_bounds = array<i64: 384, 128>}, {transform_indices = @transform_2, window_bounds = array<i64: 1, 128>}, {transform_indices = @transform_3, window_bounds = array<i64: 1, 128>}, {transform_indices = @transform_4, window_bounds = array<i64: 16, 128>}]} {
    %c0_i32 = arith.constant 0 : i32
    %0 = arith.cmpi eq, %arg2, %c0_i32 : i32
    %1 = arith.extui %0 : i1 to i32
    %c0_i32_0 = arith.constant 0 : i32
    %2 = arith.cmpi ne, %1, %c0_i32_0 : i32
    scf.if %2 {
      %cst_10 = arith.constant 0.000000e+00 : f32
      %12 = vector.broadcast %cst_10 : f32 to vector<16x128xf32>
      %c0_11 = arith.constant 0 : index
      %c0_12 = arith.constant 0 : index
      %13 = vector.load %arg7[%c0_11, %c0_12] : memref<16x128xf32, #tpu.memory_space<vmem>>, vector<16x128xf32>
      tpu.vector_store %arg7[%c0_11, %c0_12], %12 {strides = array<i32>} : memref<16x128xf32, #tpu.memory_space<vmem>>, vector<16x128xf32>,
    } else {
    }
    %c0 = arith.constant 0 : index
    %c0_1 = arith.constant 0 : index
    %3 = vector.load %arg7[%c0, %c0_1] : memref<16x128xf32, #tpu.memory_space<vmem>>, vector<16x128xf32>
    %c0_2 = arith.constant 0 : index
    %c0_3 = arith.constant 0 : index
    %4 = vector.load %arg3[%c0_2, %c0_3] : memref<16x384xbf16, #tpu.memory_space<vmem>>, vector<16x384xbf16>
    %c0_4 = arith.constant 0 : index
    %c0_5 = arith.constant 0 : index
    %5 = vector.load %arg4[%c0_4, %c0_5] : memref<384x128xbf16, #tpu.memory_space<vmem>>, vector<384x128xbf16>
    %cst = arith.constant dense<0.000000e+00> : vector<16x128xf32>
    %6 = tpu.matmul %4, %5, %cst {dimension_numbers = #tpu.dot_dimension_numbers<[1], [0], [0], [1], [0, 0, 1, 1], [], []>} : vector<16x384xbf16>, vector<384x128xbf16>, vector<16x128xf32> -> vector<16x128xf32>
    %7 = arith.addf %3, %6 : vector<16x128xf32>
    %c0_6 = arith.constant 0 : index
    %c0_7 = arith.constant 0 : index
    %8 = vector.load %arg7[%c0_6, %c0_7] : memref<16x128xf32, #tpu.memory_space<vmem>>, vector<16x128xf32>
    tpu.vector_store %arg7[%c0_6, %c0_7], %7 {strides = array<i32>} : memref<16x128xf32, #tpu.memory_space<vmem>>, vector<16x128xf32>,
    %c0_i32_8 = arith.constant 0 : i32
    %9 = arith.cmpi eq, %arg2, %c0_i32_8 : i32
    %10 = arith.extui %9 : i1 to i32
    %c0_i32_9 = arith.constant 0 : i32
    %11 = arith.cmpi ne, %10, %c0_i32_9 : i32
    scf.if %11 {
      %c0_10 = arith.constant 0 : index
      %c0_11 = arith.constant 0 : index
      %12 = vector.load %arg7[%c0_10, %c0_11] : memref<16x128xf32, #tpu.memory_space<vmem>>, vector<16x128xf32>
      %c0_12 = arith.constant 0 : index
      %c0_13 = arith.constant 0 : index
      %13 = vector.load %arg5[%c0_12, %c0_13] : memref<1x128xf32, #tpu.memory_space<vmem>>, vector<1x128xf32>
      %14 = vector.broadcast %13 : vector<1x128xf32> to vector<16x128xf32>
      %15 = arith.mulf %12, %14 : vector<16x128xf32>
      %c0_14 = arith.constant 0 : index
      %c0_15 = arith.constant 0 : index
      %16 = vector.load %arg6[%c0_14, %c0_15] : memref<1x128xf32, #tpu.memory_space<vmem>>, vector<1x128xf32>
      %17 = vector.broadcast %16 : vector<1x128xf32> to vector<16x128xf32>
      %18 = arith.addf %15, %17 : vector<16x128xf32>
      %c0_16 = arith.constant 0 : index
      %c0_17 = arith.constant 0 : index
      %19 = vector.load %arg7[%c0_16, %c0_17] : memref<16x128xf32, #tpu.memory_space<vmem>>, vector<16x128xf32>
      tpu.vector_store %arg7[%c0_16, %c0_17], %18 {strides = array<i32>} : memref<16x128xf32, #tpu.memory_space<vmem>>, vector<16x128xf32>,
    } else {
    }
    return
  }
  func.func @transform_0(%arg0: i32, %arg1: i32, %arg2: i32) -> (i32, i32) {
    %c0_i32 = arith.constant 0 : i32
    return %arg0, %arg2 : i32, i32
  }
  func.func @transform_1(%arg0: i32, %arg1: i32, %arg2: i32) -> (i32, i32) {
    %c0_i32 = arith.constant 0 : i32
    return %arg2, %arg1 : i32, i32
  }
  func.func @transform_2(%arg0: i32, %arg1: i32, %arg2: i32) -> (i32, i32) {
    %c0_i32 = arith.constant 0 : i32
    %c0_i32_0 = arith.constant 0 : i32
    return %c0_i32, %arg1 : i32, i32
  }
  func.func @transform_3(%arg0: i32, %arg1: i32, %arg2: i32) -> (i32, i32) {
    %c0_i32 = arith.constant 0 : i32
    %c0_i32_0 = arith.constant 0 : i32
    return %c0_i32, %arg1 : i32, i32
  }
  func.func @transform_4(%arg0: i32, %arg1: i32, %arg2: i32) -> (i32, i32) {
    %c0_i32 = arith.constant 0 : i32
    return %arg0, %arg1 : i32, i32
  }
}

</mosaic_0001>

<llo_original>
// kernel: tpu_custom_call.1
$region0: #{tpu_custom_call.1}
  #allocation0 [shape = 'u32[]', space=smem, size = 0x4, offset = 0x4, fixed_abs, tag = 'smem constant byte address 0x4 - core index']
  #allocation1 [shape = 'u32[144,128]{1,0:T(1,128)}', space=vmem, size = 0x12000, scoped, tag = 'internal scratch']
  %s0 = inlined_call_operand.hbm [shape: bf16[16,384], index: 0, kind: input, shape index: {}]
  %s1 = inlined_call_operand.hbm [shape: bf16[384,128], index: 1, kind: input, shape index: {}]
  %s2 = inlined_call_operand.vmem [shape: f32[1,128], index: 2, kind: input, shape index: {}]
  %s3 = inlined_call_operand.vmem [shape: f32[1,128], index: 3, kind: input, shape index: {}]
  %s4 = inlined_call_operand.hbm [shape: f32[16,128], index: 4, kind: output, shape index: {}]
  %s5 = sld [smem:[#allocation0]]
  $region42: #{tpu_custom_call.1} parent=0
    _
  %s7 = ssub.s32 1, %s5
  %s8 = scalar_select 0, %s7, %s5
  $region1: #{tpu_custom_call.1} parent=0
    #allocation2 [shape = 'u8[12288]{0}', space=vmem, size = 0x3000, scoped, tag = 'input window, operand 0, single buffered']
    #allocation3 [shape = 's32[1]{0}', space=sflag, size = 0x4, scoped, tag = 'scoped memory for tpu_custom_call.1']
    #allocation4 [shape = 's32[1]{0}', space=sflag, size = 0x4, scoped, tag = 'scoped memory for tpu_custom_call.1']
    #allocation5 [shape = 'u8[98304]{0}', space=vmem, size = 0x18000, scoped, tag = 'input window, operand 1, single buffered']
    #allocation6 [shape = 's32[1]{0}', space=sflag, size = 0x4, scoped, tag = 'scoped memory for tpu_custom_call.1']
    #allocation7 [shape = 'u8[8192]{0}', space=vmem, size = 0x2000, scoped, tag = 'output window, operand 0, single buffered']
    %9 = vsyncpa [#allocation3], 0
    %10 = vsyncpa [#allocation6], 0
    %11 = vsyncpa [#allocation4], 0
    // Predicated region
    $region2: #{tpu_custom_call.1} parent=1 // pred_check
      _
    $region3: #{tpu_custom_call.1} parent=1 // pred_check_branch
      %13 = sbr.rel (0) target = $region5
    $region4: #{tpu_custom_call.1} parent=1 // pred_region
      %s15 = ssub.s32 384, 384
      %16 = vsyncadd [#allocation3], %s15
      %s17 = sshll.u32 [#allocation2], 4
      %s18 = int_to_ptr.vmem [resolvable:$true] %s17
      %23 = dma.hbm_to_vmem [thread:$0]  %s0, 384, %s18, [#allocation3], 192, 192, 12
    $region5: #{tpu_custom_call.1} parent=1 // pred_fallthru
      _
    // Predicated region
    $region6: #{tpu_custom_call.1} parent=1 // pred_check
      _
    $region7: #{tpu_custom_call.1} parent=1 // pred_check_branch
      %25 = sbr.rel (0) target = $region9
    $region8: #{tpu_custom_call.1} parent=1 // pred_region
      %s27 = ssub.s32 3072, 3072
      %28 = vsyncadd [#allocation6], %s27
      %s29 = sshll.u32 [#allocation5], 4
      %s30 = int_to_ptr.vmem [resolvable:$true] %s29
      %35 = dma.hbm_to_vmem [thread:$0]  %s1, 3072, %s30, [#allocation6], 64, 64, 4
    $region9: #{tpu_custom_call.1} parent=1 // pred_fallthru
      _
    // Predicated region
    $region10: #{tpu_custom_call.1} parent=1 // pred_check
      _
    $region11: #{tpu_custom_call.1} parent=1 // pred_check_branch
      %37 = sbr.rel (0) target = $region13
    $region12: #{tpu_custom_call.1} parent=1 // pred_region
      _
    $region13: #{tpu_custom_call.1} parent=1 // pred_fallthru
      _
    // Predicated region
    $region14: #{tpu_custom_call.1} parent=1 // pred_check
      _
    $region15: #{tpu_custom_call.1} parent=1 // pred_check_branch
      %39 = sbr.rel (0) target = $region17
    $region16: #{tpu_custom_call.1} parent=1 // pred_region
      _
    $region17: #{tpu_custom_call.1} parent=1 // pred_fallthru
      _
    // Predicated region
    $region18: #{tpu_custom_call.1} parent=1 // pred_check
      _
    $region19: #{tpu_custom_call.1} parent=1 // pred_check_branch
      %41 = sbr.rel (0) target = $region21
    $region20: #{tpu_custom_call.1} parent=1 // pred_region
      %42 = dma.done [#allocation3], 384
    $region21: #{tpu_custom_call.1} parent=1 // pred_fallthru
      _
    // Predicated region
    $region22: #{tpu_custom_call.1} parent=1 // pred_check
      _
    $region23: #{tpu_custom_call.1} parent=1 // pred_check_branch
      %44 = sbr.rel (0) target = $region25
    $region24: #{tpu_custom_call.1} parent=1 // pred_region
      %45 = dma.done [#allocation6], 3072
    $region25: #{tpu_custom_call.1} parent=1 // pred_fallthru
      _
    %p47 = scmp.eq.s32.totalorder 0, 0
    // Predicated region
    $region26: #{tpu_custom_call.1} parent=1 // pred_check
      %p48 = pneg %p47
    $region27: #{tpu_custom_call.1} parent=1 // pred_check_branch
      %50 = sbr.rel (%p48) target = $region29
    $region28: #{tpu_custom_call.1} parent=1 // pred_region
      %51 = vst [vmem:[#allocation7] sm:$0xff] 0.0
      %52 = vst [vmem:[#allocation7 + $0x8] sm:$0xff] 0.0
    $region29: #{tpu_custom_call.1} parent=1 // pred_fallthru
      _
    %v53 = vld [vmem:[#allocation7] sm:$0xff]
    %v54 = vld [vmem:[#allocation7 + $0x8] sm:$0xff]
    %v55 = vld [vmem:[#allocation2] sm:$0xff]
    %v56 = vld [vmem:[#allocation2 + $0x8] sm:$0xf]
    %v57 = vld [vmem:[#allocation2 + $0xc] sm:$0xff]
    %v58 = vld [vmem:[#allocation2 + $0x14] sm:$0xf]
    %v59 = vld [vmem:[#allocation5] sm:$0xf]
    %v60 = vld [vmem:[#allocation5 + $0x4] sm:$0xf]
    %v61 = vld [vmem:[#allocation5 + $0x8] sm:$0xf]
    %v62 = vld [vmem:[#allocation5 + $0xc] sm:$0xf]
    %v63 = vld [vmem:[#allocation5 + $0x10] sm:$0xf]
    %v64 = vld [vmem:[#allocation5 + $0x14] sm:$0xf]
    %v65 = vld [vmem:[#allocation5 + $0x18] sm:$0xf]
    %v66 = vld [vmem:[#allocation5 + $0x1c] sm:$0xf]
    %v67 = vld [vmem:[#allocation5 + $0x20] sm:$0xf]
    %v68 = vld [vmem:[#allocation5 + $0x24] sm:$0xf]
    %v69 = vld [vmem:[#allocation5 + $0x28] sm:$0xf]
    %v70 = vld [vmem:[#allocation5 + $0x2c] sm:$0xf]
    %v71 = vld [vmem:[#allocation5 + $0x30] sm:$0xf]
    %v72 = vld [vmem:[#allocation5 + $0x34] sm:$0xf]
    %v73 = vld [vmem:[#allocation5 + $0x38] sm:$0xf]
    %v74 = vld [vmem:[#allocation5 + $0x3c] sm:$0xf]
    %v75 = vld [vmem:[#allocation5 + $0x40] sm:$0xf]
    %v76 = vld [vmem:[#allocation5 + $0x44] sm:$0xf]
    %v77 = vld [vmem:[#allocation5 + $0x48] sm:$0xf]
    %v78 = vld [vmem:[#allocation5 + $0x4c] sm:$0xf]
    %v79 = vld [vmem:[#allocation5 + $0x50] sm:$0xf]
    %v80 = vld [vmem:[#allocation5 + $0x54] sm:$0xf]
    %v81 = vld [vmem:[#allocation5 + $0x58] sm:$0xf]
    %v82 = vld [vmem:[#allocation5 + $0x5c] sm:$0xf]
    %v83 = vld [vmem:[#allocation5 + $0x60] sm:$0xf]
    %v84 = vld [vmem:[#allocation5 + $0x64] sm:$0xf]
    %v85 = vld [vmem:[#allocation5 + $0x68] sm:$0xf]
    %v86 = vld [vmem:[#allocation5 + $0x6c] sm:$0xf]
    %v87 = vld [vmem:[#allocation5 + $0x70] sm:$0xf]
    %v88 = vld [vmem:[#allocation5 + $0x74] sm:$0xf]
    %v89 = vld [vmem:[#allocation5 + $0x78] sm:$0xf]
    %v90 = vld [vmem:[#allocation5 + $0x7c] sm:$0xf]
    %v91 = vld [vmem:[#allocation5 + $0x80] sm:$0xf]
    %v92 = vld [vmem:[#allocation5 + $0x84] sm:$0xf]
    %v93 = vld [vmem:[#allocation5 + $0x88] sm:$0xf]
    %v94 = vld [vmem:[#allocation5 + $0x8c] sm:$0xf]
    %v95 = vld [vmem:[#allocation5 + $0x90] sm:$0xf]
    %v96 = vld [vmem:[#allocation5 + $0x94] sm:$0xf]
    %v97 = vld [vmem:[#allocation5 + $0x98] sm:$0xf]
    %v98 = vld [vmem:[#allocation5 + $0x9c] sm:$0xf]
    %v99 = vld [vmem:[#allocation5 + $0xa0] sm:$0xf]
    %v100 = vld [vmem:[#allocation5 + $0xa4] sm:$0xf]
    %v101 = vld [vmem:[#allocation5 + $0xa8] sm:$0xf]
    %v102 = vld [vmem:[#allocation5 + $0xac] sm:$0xf]
    %v103 = vld [vmem:[#allocation5 + $0xb0] sm:$0xf]
    %v104 = vld [vmem:[#allocation5 + $0xb4] sm:$0xf]
    %v105 = vld [vmem:[#allocation5 + $0xb8] sm:$0xf]
    %v106 = vld [vmem:[#allocation5 + $0xbc] sm:$0xf]
    %v111 = vunpack.c.l.b16 %v55
    %v112 = vunpack.c.h.b16 %v55
    %v113 = vunpack.c.l.b16 %v56
    %v114 = vunpack.c.l.b16 %v57
    %v115 = vunpack.c.h.b16 %v57
    %v116 = vunpack.c.l.b16 %v58
    %v117 = vpack.c.b16 %v114, %v111
    %v118 = vpack.c.b16 %v115, %v112
    %v119 = vpack.c.b16 %v116, %v113
    %v171 = vunpack.c.l.b16 %v59
    %v172 = vunpack.c.l.b16 %v60
    %v173 = vunpack.c.l.b16 %v61
    %v174 = vunpack.c.l.b16 %v62
    %v175 = vunpack.c.l.b16 %v63
    %v176 = vunpack.c.l.b16 %v64
    %v177 = vunpack.c.l.b16 %v65
    %v178 = vunpack.c.l.b16 %v66
    %v179 = vunpack.c.l.b16 %v67
    %v180 = vunpack.c.l.b16 %v68
    %v181 = vunpack.c.l.b16 %v69
    %v182 = vunpack.c.l.b16 %v70
    %v183 = vunpack.c.l.b16 %v71
    %v184 = vunpack.c.l.b16 %v72
    %v185 = vunpack.c.l.b16 %v73
    %v186 = vunpack.c.l.b16 %v74
    %v187 = vunpack.c.l.b16 %v75
    %v188 = vunpack.c.l.b16 %v76
    %v189 = vunpack.c.l.b16 %v77
    %v190 = vunpack.c.l.b16 %v78
    %v191 = vunpack.c.l.b16 %v79
    %v192 = vunpack.c.l.b16 %v80
    %v193 = vunpack.c.l.b16 %v81
    %v194 = vunpack.c.l.b16 %v82
    %v195 = vunpack.c.l.b16 %v83
    %v196 = vunpack.c.l.b16 %v84
    %v197 = vunpack.c.l.b16 %v85
    %v198 = vunpack.c.l.b16 %v86
    %v199 = vunpack.c.l.b16 %v87
    %v200 = vunpack.c.l.b16 %v88
    %v201 = vunpack.c.l.b16 %v89
    %v202 = vunpack.c.l.b16 %v90
    %v203 = vunpack.c.l.b16 %v91
    %v204 = vunpack.c.l.b16 %v92
    %v205 = vunpack.c.l.b16 %v93
    %v206 = vunpack.c.l.b16 %v94
    %v207 = vunpack.c.l.b16 %v95
    %v208 = vunpack.c.l.b16 %v96
    %v209 = vunpack.c.l.b16 %v97
    %v210 = vunpack.c.l.b16 %v98
    %v211 = vunpack.c.l.b16 %v99
    %v212 = vunpack.c.l.b16 %v100
    %v213 = vunpack.c.l.b16 %v101
    %v214 = vunpack.c.l.b16 %v102
    %v215 = vunpack.c.l.b16 %v103
    %v216 = vunpack.c.l.b16 %v104
    %v217 = vunpack.c.l.b16 %v105
    %v218 = vunpack.c.l.b16 %v106
    %v219 = vpack.c.b16 %v172, %v171
    %v220 = vpack.c.b16 %v174, %v173
    %v221 = vpack.c.b16 %v176, %v175
    %v222 = vpack.c.b16 %v178, %v177
    %v223 = vpack.c.b16 %v180, %v179
    %v224 = vpack.c.b16 %v182, %v181
    %v225 = vpack.c.b16 %v184, %v183
    %v226 = vpack.c.b16 %v186, %v185
    %v227 = vpack.c.b16 %v188, %v187
    %v228 = vpack.c.b16 %v190, %v189
    %v229 = vpack.c.b16 %v192, %v191
    %v230 = vpack.c.b16 %v194, %v193
    %v231 = vpack.c.b16 %v196, %v195
    %v232 = vpack.c.b16 %v198, %v197
    %v233 = vpack.c.b16 %v200, %v199
    %v234 = vpack.c.b16 %v202, %v201
    %v235 = vpack.c.b16 %v204, %v203
    %v236 = vpack.c.b16 %v206, %v205
    %v237 = vpack.c.b16 %v208, %v207
    %v238 = vpack.c.b16 %v210, %v209
    %v239 = vpack.c.b16 %v212, %v211
    %v240 = vpack.c.b16 %v214, %v213
    %v241 = vpack.c.b16 %v216, %v215
    %v242 = vpack.c.b16 %v218, %v217
    %267 = vmatprep.subr.bf16.mxu0 0
    %268 = vmatpush1.bf16.msra.mxu0 %v219
    %269 = vmatprep.subr.bf16.mxu0 0
    %270 = vmatpush1.bf16.msra.mxu0 %v220
    %271 = vmatprep.subr.bf16.mxu0 0
    %272 = vmatpush1.bf16.msra.mxu0 %v221
    %273 = vmatprep.subr.bf16.mxu0 0
    %274 = vmatpush1.bf16.msra.mxu0 %v222
    %275 = vmatprep.subr.bf16.mxu0 0
    %276 = vmatpush1.bf16.msra.mxu0 %v223
    %277 = vmatprep.subr.bf16.mxu0 0
    %278 = vmatpush1.bf16.msra.mxu0 %v224
    %279 = vmatprep.subr.bf16.mxu0 0
    %280 = vmatpush1.bf16.msra.mxu0 %v225
    %281 = vmatprep.subr.bf16.mxu0 0
    %282 = vmatpush1.bf16.msra.mxu0 %v226
    %283 = vmatprep.subr.bf16.mxu0 0
    %284 = vmatpush1.bf16.msra.mxu0 %v227
    %285 = vmatprep.subr.bf16.mxu0 0
    %286 = vmatpush1.bf16.msra.mxu0 %v228
    %287 = vmatprep.subr.bf16.mxu0 0
    %288 = vmatpush1.bf16.msra.mxu0 %v229
    %289 = vmatprep.subr.bf16.mxu0 0
    %290 = vmatpush1.bf16.msra.mxu0 %v230
    %291 = vmatprep.subr.bf16.mxu0 0
    %292 = vmatpush1.bf16.msra.mxu0 %v231
    %293 = vmatprep.subr.bf16.mxu0 0
    %294 = vmatpush1.bf16.msra.mxu0 %v232
    %295 = vmatprep.subr.bf16.mxu0 0
    %296 = vmatpush1.bf16.msra.mxu0 %v233
    %297 = vmatprep.subr.bf16.mxu0 0
    %298 = vmatpush1.bf16.msra.mxu0 %v234
    %299 = vmatprep.mubr.bf16.mxu0 %v118
    %300 = vmatmul.mubr.bf16.gmra.mrb[0].mxu0 %v117
    %v301 = vpop.f32.mrb[0].mxu0
    %v302 = vadd.f32 0.0, %v301
    %v303 = vpop.f32.mrb[0].mxu0
    %v304 = vpop.f32.mrb[0].mxu0
    %v305 = vadd.f32 0.0, %v304
    %v306 = vpop.f32.mrb[0].mxu0
    %307 = vdwg.mxu0
    %308 = vmatprep.subr.bf16.mxu0 0
    %309 = vmatpush1.bf16.msra.mxu0 %v235
    %310 = vmatprep.subr.bf16.mxu0 0
    %311 = vmatpush1.bf16.msra.mxu0 %v236
    %312 = vmatprep.subr.bf16.mxu0 0
    %313 = vmatpush1.bf16.msra.mxu0 %v237
    %314 = vmatprep.subr.bf16.mxu0 0
    %315 = vmatpush1.bf16.msra.mxu0 %v238
    %316 = vmatprep.subr.bf16.mxu0 0
    %317 = vmatpush1.bf16.msra.mxu0 %v239
    %318 = vmatprep.subr.bf16.mxu0 0
    %319 = vmatpush1.bf16.msra.mxu0 %v240
    %320 = vmatprep.subr.bf16.mxu0 0
    %321 = vmatpush1.bf16.msra.mxu0 %v241
    %322 = vmatprep.subr.bf16.mxu0 0
    %323 = vmatpush1.bf16.msra.mxu0 %v242
    %324 = vmatprep.subr.bf16.mxu0 0
    %325 = vmatpush1.bf16.msra.mxu0 0
    %326 = vmatprep.subr.bf16.mxu0 0
    %327 = vmatpush1.bf16.msra.mxu0 0
    %328 = vmatprep.subr.bf16.mxu0 0
    %329 = vmatpush1.bf16.msra.mxu0 0
    %330 = vmatprep.subr.bf16.mxu0 0
    %331 = vmatpush1.bf16.msra.mxu0 0
    %332 = vmatprep.subr.bf16.mxu0 0
    %333 = vmatpush1.bf16.msra.mxu0 0
    %334 = vmatprep.subr.bf16.mxu0 0
    %335 = vmatpush1.bf16.msra.mxu0 0
    %336 = vmatprep.subr.bf16.mxu0 0
    %337 = vmatpush1.bf16.msra.mxu0 0
    %338 = vmatprep.subr.bf16.mxu0 0
    %339 = vmatpush1.bf16.msra.mxu0 0
    %340 = vmatprep.mubr.bf16.mxu0 0
    %341 = vmatmul.mubr.bf16.gmra.mrb[0].mxu0 %v119
    %v342 = vpop.f32.mrb[0].mxu0
    %v343 = vadd.f32 %v302, %v342
    %v344 = vpop.f32.mrb[0].mxu0
    %v345 = vpop.f32.mrb[0].mxu0
    %v346 = vadd.f32 %v305, %v345
    %v347 = vpop.f32.mrb[0].mxu0
    %348 = vdwg.mxu0
    %v349 = vadd.f32 %v53, %v343
    %v350 = vadd.f32 %v54, %v346
    %351 = vst [vmem:[#allocation7] sm:$0xff] %v349
    %352 = vst [vmem:[#allocation7 + $0x8] sm:$0xff] %v350
    // Predicated region
    $region30: #{tpu_custom_call.1} parent=1 // pred_check
      %p353 = pneg %p47
    $region31: #{tpu_custom_call.1} parent=1 // pred_check_branch
      %355 = sbr.rel (%p353) target = $region33
    $region32: #{tpu_custom_call.1} parent=1 // pred_region
      %v356 = vld [vmem:[#allocation7] sm:$0xff]
      %v357 = vld [vmem:[#allocation7 + $0x8] sm:$0xff]
      %v358 = vld [vmem:[%s2] sm:$0x1]
      %v360 = vlaneseq
      %v361 = vshrl.u32 %v360, 7
      %v362 = vsub.s32 0, %v361
      %v363 = vrot.slane %v358, %v362
      %v365 = vmul.f32 %v356, %v363
      %v366 = vmul.f32 %v357, %v363
      %v367 = vld [vmem:[%s3] sm:$0x1]
      %v369 = vlaneseq
      %v370 = vshrl.u32 %v369, 7
      %v371 = vsub.s32 0, %v370
      %v372 = vrot.slane %v367, %v371
      %v374 = vadd.f32 %v365, %v372
      %v375 = vadd.f32 %v366, %v372
      %376 = vst [vmem:[#allocation7] sm:$0xff] %v374
      %377 = vst [vmem:[#allocation7 + $0x8] sm:$0xff] %v375
    $region33: #{tpu_custom_call.1} parent=1 // pred_fallthru
      _
    // Predicated region
    $region34: #{tpu_custom_call.1} parent=1 // pred_check
      _
    $region35: #{tpu_custom_call.1} parent=1 // pred_check_branch
      %379 = sbr.rel (0) target = $region37
    $region36: #{tpu_custom_call.1} parent=1 // pred_region
      %s381 = ssub.s32 256, 256
      %382 = vsyncadd [#allocation4], %s381
      %s383 = sshll.u32 [#allocation7], 4
      %s384 = int_to_ptr.vmem [resolvable:$true] %s383
      %389 = dma.vmem_to_hbm [thread:$0]  %s384, 256, %s4, [#allocation4], 128, 128, 8
    $region37: #{tpu_custom_call.1} parent=1 // pred_fallthru
      _
    // Predicated region
    $region38: #{tpu_custom_call.1} parent=1 // pred_check
      _
    $region39: #{tpu_custom_call.1} parent=1 // pred_check_branch
      %391 = sbr.rel (0) target = $region41
    $region40: #{tpu_custom_call.1} parent=1 // pred_region
      %392 = dma.done [#allocation4], 256
    $region41: #{tpu_custom_call.1} parent=1 // pred_fallthru
      _
    %393 = vsyncpa [#allocation3], 1
    %394 = vsyncpa [#allocation6], 1
    %395 = vsyncpa [#allocation4], 1

</llo_original>
